<compile_context>
chip_gen: v7x
topology: tpu7x:2x2x1
jax: 0.10.0
libtpu: 0.0.40
codegen_flags: <defaults>
</compile_context>

<pallas_src>
import functools

import jax
import jax.numpy as jnp
from jax.experimental import pallas as pl
from jax.experimental.pallas import tpu as pltpu


def _round_up(a, b):
    return (a + b - 1) // b * b


def _affine_kernel(x_ref, w_ref, b_ref, o_ref):
    # (tm, K) @ (K, O_pad) on the MXU with f32 accumulation; bias broadcasts
    # over the sublane (row) axis.  O_pad is a multiple of 128 so the store
    # path is unmasked full-lane vst.
    y = jnp.dot(x_ref[...], w_ref[...], preferred_element_type=jnp.float32)
    o_ref[...] = (y + b_ref[...]).astype(o_ref.dtype)


def fuse_params(w1_t, b1, w2_t, b2, dtype=jnp.float32):
    """One-time parameter prep (do this at module init, NOT per call).

    Fuses the two eval-mode linears (Dropout == identity) and pads the output
    feature dim to a multiple of 128 lanes.

    w1_t: (input_size, 256)   -- transposed nn.Linear weight (in, out) layout
    b1:   (1, 256)
    w2_t: (256, output_size)
    b2:   (1, output_size)
    Returns (w_eff (K, O_pad), b_eff (1, O_pad), output_size).
    """
    out_features = w2_t.shape[1]
    w_eff = jnp.dot(w1_t, w2_t, preferred_element_type=jnp.float32).astype(dtype)
    b_eff = (jnp.dot(b1, w2_t, preferred_element_type=jnp.float32) + b2).astype(dtype)
    o_pad = _round_up(max(out_features, 128), 128)
    if o_pad != out_features:
        w_eff = jnp.pad(w_eff, ((0, 0), (0, o_pad - out_features)))
        b_eff = jnp.pad(b_eff, ((0, 0), (0, o_pad - out_features)))
    return w_eff, b_eff, out_features


@functools.partial(jax.jit, static_argnames=("out_features", "tm"))
def bold_projector_simple_fwd(x, w_eff, b_eff, *, out_features, tm=None):
    """Inference forward: x (M, input_size) -> (M, out_features).

    w_eff / b_eff come from fuse_params() (already fused + lane-padded).
    """
    M, K = x.shape
    O_pad = w_eff.shape[1]
    dtype = x.dtype

    # --- Row tile heuristic ---------------------------------------------
    if tm is None:
        m8 = _round_up(M, 8)
        if m8 >= 512:
            # 2-way split (>=256 rows per core) pays off on v7x megacore;
            # cap at 1024 rows/step (VMEM is nowhere near binding).
            tm = min(1024, _round_up(pl.cdiv(m8, 2), 8))
        else:
            # Single grid step: avoids per-step pipeline overhead on
            # single-TensorCore v5e/v6e and keeps the tile well fed.
            tm = m8
    else:
        tm = _round_up(int(tm), 8)  # sublane divisibility

    grid = (pl.cdiv(M, tm),)

    flops = 2 * M * K * O_pad
    bytes_accessed = 4 * (M * K + K * O_pad + O_pad + M * O_pad)

    out = pl.pallas_call(
        _affine_kernel,
        out_shape=jax.ShapeDtypeStruct((M, O_pad), dtype),
        grid_spec=pltpu.PrefetchScalarGridSpec(
            num_scalar_prefetch=0,
            grid=grid,
            in_specs=[
                pl.BlockSpec((tm, K), lambda i: (i, 0)),       # x row tile
                pl.BlockSpec((K, O_pad), lambda i: (0, 0)),    # fused weight (resident)
                pl.BlockSpec((1, O_pad), lambda i: (0, 0)),    # fused bias (resident)
            ],
            out_specs=pl.BlockSpec((tm, O_pad), lambda i: (i, 0)),
        ),
        compiler_params=pltpu.CompilerParams(
            dimension_semantics=("parallel",),
        ),
        cost_estimate=pl.CostEstimate(
            flops=flops, transcendentals=0, bytes_accessed=bytes_accessed),
    )(x, w_eff, b_eff)

    return out[:, :out_features]


def init_params(key, input_size, output_size, hidden=256, dtype=jnp.float32):
    """Deterministic synthetic parameters matching nn.Linear init & shapes.

    PyTorch stores Linear weight as (out_features, in_features); we keep the
    transposed (in, out) layout so the fusion multiplies without a transpose.
    """
    k1, k2, k3, k4 = jax.random.split(key, 4)
    s1 = 1.0 / float(input_size) ** 0.5
    s2 = 1.0 / float(hidden) ** 0.5
    w1_t = jax.random.uniform(k1, (input_size, hidden), dtype, -s1, s1)
    b1 = jax.random.uniform(k2, (1, hidden), dtype, -s1, s1)
    w2_t = jax.random.uniform(k3, (hidden, output_size), dtype, -s2, s2)
    b2 = jax.random.uniform(k4, (1, output_size), dtype, -s2, s2)
    return w1_t, b1, w2_t, b2


if __name__ == "__main__":
    key = jax.random.PRNGKey(0)
    kx, kp = jax.random.split(key)

    # Small, module-consistent shapes: batch of flattened BOLD feature vectors.
    batch = 16
    input_size = 32
    output_size = 64

    x = jax.random.normal(kx, (batch, input_size), jnp.float32)
    w1_t, b1, w2_t, b2 = init_params(kp, input_size, output_size)

    # One-time param prep (fusion + lane padding) — hoisted out of the fwd.
    w_eff, b_eff, out_features = fuse_params(w1_t, b1, w2_t, b2)
    w_eff = jax.block_until_ready(w_eff)
    b_eff = jax.block_until_ready(b_eff)

    out = bold_projector_simple_fwd(x, w_eff, b_eff, out_features=out_features)
    out = jax.block_until_ready(out)

    # Reference check against plain JAX (same math as the PyTorch module, eval).
    ref = (x @ w1_t + b1) @ w2_t + b2
    assert out.shape == (batch, output_size)
    assert jnp.allclose(out, ref, atol=1e-4, rtol=1e-4)

    # Ragged batch: exercises the masked boundary block (no host-side padding).
    x2 = jax.random.normal(kx, (37, input_size), jnp.float32)
    out2 = jax.block_until_ready(
        bold_projector_simple_fwd(x2, w_eff, b_eff, out_features=out_features))
    ref2 = (x2 @ w1_t + b1) @ w2_t + b2
    assert out2.shape == (37, output_size)
    assert jnp.allclose(out2, ref2, atol=1e-4, rtol=1e-4)

    # Larger batch: exercises the >=512-row 2-way (megacore) split path.
    x3 = jax.random.normal(kx, (600, input_size), jnp.float32)
    out3 = jax.block_until_ready(
        bold_projector_simple_fwd(x3, w_eff, b_eff, out_features=out_features))
    ref3 = (x3 @ w1_t + b1) @ w2_t + b2
    assert out3.shape == (600, output_size)
    assert jnp.allclose(out3, ref3, atol=1e-4, rtol=1e-4)

    print("KERNEL_OK")
</pallas_src>

<mosaic_0001>
module attributes {stable_mosaic.version = 11 : i64} {
  func.func @_affine_kernel(%arg0: i32, %arg1: memref<16x32xf32, #tpu.memory_space<vmem>>, %arg2: memref<32x128xf32, #tpu.memory_space<vmem>>, %arg3: memref<1x128xf32, #tpu.memory_space<vmem>>, %arg4: memref<16x128xf32, #tpu.memory_space<vmem>>) attributes {dimension_semantics = [#tpu.dimension_semantics<parallel>], iteration_bounds = array<i64: 1>, scalar_prefetch = 0 : i64, scratch_operands = 0 : i64, tpu.core_type = #tpu.core_type<tc>, window_params = [{transform_indices = @transform_0, window_bounds = array<i64: 16, 32>}, {pipeline_mode = #tpu.pipeline_mode<synchronous>, transform_indices = @transform_1, window_bounds = array<i64: 32, 128>}, {pipeline_mode = #tpu.pipeline_mode<synchronous>, transform_indices = @transform_2, window_bounds = array<i64: 1, 128>}, {transform_indices = @transform_3, window_bounds = array<i64: 16, 128>}]} {
    %c0 = arith.constant 0 : index
    %c0_0 = arith.constant 0 : index
    %0 = vector.load %arg1[%c0, %c0_0] : memref<16x32xf32, #tpu.memory_space<vmem>>, vector<16x32xf32>
    %c0_1 = arith.constant 0 : index
    %c0_2 = arith.constant 0 : index
    %1 = vector.load %arg2[%c0_1, %c0_2] : memref<32x128xf32, #tpu.memory_space<vmem>>, vector<32x128xf32>
    %cst = arith.constant dense<0.000000e+00> : vector<16x128xf32>
    %2 = tpu.matmul %0, %1, %cst {dimension_numbers = #tpu.dot_dimension_numbers<[1], [0], [0], [1], [0, 0, 1, 1], [], []>} : vector<16x32xf32>, vector<32x128xf32>, vector<16x128xf32> -> vector<16x128xf32>
    %c0_3 = arith.constant 0 : index
    %c0_4 = arith.constant 0 : index
    %3 = vector.load %arg3[%c0_3, %c0_4] : memref<1x128xf32, #tpu.memory_space<vmem>>, vector<1x128xf32>
    %4 = vector.broadcast %3 : vector<1x128xf32> to vector<16x128xf32>
    %5 = arith.addf %2, %4 : vector<16x128xf32>
    %c0_5 = arith.constant 0 : index
    %c0_6 = arith.constant 0 : index
    %6 = vector.load %arg4[%c0_5, %c0_6] : memref<16x128xf32, #tpu.memory_space<vmem>>, vector<16x128xf32>
    tpu.vector_store %arg4[%c0_5, %c0_6], %5 {strides = array<i32>} : memref<16x128xf32, #tpu.memory_space<vmem>>, vector<16x128xf32>,
    return
  }
  func.func @transform_0(%arg0: i32) -> (i32, i32) {
    %c0_i32 = arith.constant 0 : i32
    %c0_i32_0 = arith.constant 0 : i32
    return %arg0, %c0_i32 : i32, i32
  }
  func.func @transform_1(%arg0: i32) -> (i32, i32) {
    %c0_i32 = arith.constant 0 : i32
    %c0_i32_0 = arith.constant 0 : i32
    %c0_i32_1 = arith.constant 0 : i32
    return %c0_i32, %c0_i32_0 : i32, i32
  }
  func.func @transform_2(%arg0: i32) -> (i32, i32) {
    %c0_i32 = arith.constant 0 : i32
    %c0_i32_0 = arith.constant 0 : i32
    %c0_i32_1 = arith.constant 0 : i32
    return %c0_i32, %c0_i32_0 : i32, i32
  }
  func.func @transform_3(%arg0: i32) -> (i32, i32) {
    %c0_i32 = arith.constant 0 : i32
    %c0_i32_0 = arith.constant 0 : i32
    return %arg0, %c0_i32 : i32, i32
  }
}

</mosaic_0001>

<llo_original>
// kernel: bold_projector_simple_fwd.1
$region0: #{bold_projector_simple_fwd.1}
  #allocation0 [shape = 'u32[]', space=smem, size = 0x4, offset = 0x4, fixed_abs, tag = 'smem constant byte address 0x4 - core index']
  #allocation1 [shape = 'u32[144,128]{1,0:T(1,128)}', space=vmem, size = 0x12000, scoped, tag = 'internal scratch']
  %s0 = inlined_call_operand.hbm [shape: f32[16,32], index: 0, kind: input, shape index: {}]
  %s1 = inlined_call_operand.hbm [shape: f32[32,128], index: 1, kind: input, shape index: {}]
  %s2 = inlined_call_operand.vmem [shape: f32[1,128], index: 2, kind: input, shape index: {}]
  %s3 = inlined_call_operand.hbm [shape: f32[16,128], index: 3, kind: output, shape index: {}]
  %s4 = sld [smem:[#allocation0]]
  $region30: #{bold_projector_simple_fwd.1} parent=0
    _
  %s6 = ssub.s32 1, %s4
  %s7 = scalar_select 0, %s6, %s4
  $region1: #{bold_projector_simple_fwd.1} parent=0
    #allocation2 [shape = 'u8[8192]{0}', space=vmem, size = 0x2000, scoped, tag = 'input window, operand 0, single buffered']
    #allocation3 [shape = 's32[1]{0}', space=sflag, size = 0x4, scoped, tag = 'scoped memory for bold_projector_simple_fwd.1']
    #allocation4 [shape = 's32[1]{0}', space=sflag, size = 0x4, scoped, tag = 'scoped memory for bold_projector_simple_fwd.1']
    #allocation5 [shape = 'u8[16384]{0}', space=vmem, size = 0x4000, scoped, tag = 'input window, operand 1, single buffered']
    #allocation6 [shape = 's32[1]{0}', space=sflag, size = 0x4, scoped, tag = 'scoped memory for bold_projector_simple_fwd.1']
    #allocation7 [shape = 'u8[8192]{0}', space=vmem, size = 0x2000, scoped, tag = 'output window, operand 0, single buffered']
    %8 = vsyncpa [#allocation3], 0
    %9 = vsyncpa [#allocation6], 0
    %10 = vsyncpa [#allocation4], 0
    // Predicated region
    $region2: #{bold_projector_simple_fwd.1} parent=1 // pred_check
      _
    $region3: #{bold_projector_simple_fwd.1} parent=1 // pred_check_branch
      %12 = sbr.rel (0) target = $region5
    $region4: #{bold_projector_simple_fwd.1} parent=1 // pred_region
      %s14 = ssub.s32 256, 256
      %15 = vsyncadd [#allocation3], %s14
      %s16 = sshll.u32 [#allocation2], 4
      %s17 = int_to_ptr.vmem [resolvable:$true] %s16
      %22 = dma.hbm_to_vmem [thread:$0]  %s0, 256, %s17, [#allocation3], 128, 128, 8
    $region5: #{bold_projector_simple_fwd.1} parent=1 // pred_fallthru
      _
    // Predicated region
    $region6: #{bold_projector_simple_fwd.1} parent=1 // pred_check
      _
    $region7: #{bold_projector_simple_fwd.1} parent=1 // pred_check_branch
      %24 = sbr.rel (0) target = $region9
    $region8: #{bold_projector_simple_fwd.1} parent=1 // pred_region
      %s26 = ssub.s32 512, 512
      %27 = vsyncadd [#allocation6], %s26
      %s28 = sshll.u32 [#allocation5], 4
      %s29 = int_to_ptr.vmem [resolvable:$true] %s28
      %34 = dma.hbm_to_vmem [thread:$0]  %s1, 512, %s29, [#allocation6], 128, 128, 8
    $region9: #{bold_projector_simple_fwd.1} parent=1 // pred_fallthru
      _
    // Predicated region
    $region10: #{bold_projector_simple_fwd.1} parent=1 // pred_check
      _
    $region11: #{bold_projector_simple_fwd.1} parent=1 // pred_check_branch
      %36 = sbr.rel (0) target = $region13
    $region12: #{bold_projector_simple_fwd.1} parent=1 // pred_region
      _
    $region13: #{bold_projector_simple_fwd.1} parent=1 // pred_fallthru
      _
    // Predicated region
    $region14: #{bold_projector_simple_fwd.1} parent=1 // pred_check
      _
    $region15: #{bold_projector_simple_fwd.1} parent=1 // pred_check_branch
      %38 = sbr.rel (0) target = $region17
    $region16: #{bold_projector_simple_fwd.1} parent=1 // pred_region
      %39 = dma.done [#allocation3], 256
    $region17: #{bold_projector_simple_fwd.1} parent=1 // pred_fallthru
      _
    // Predicated region
    $region18: #{bold_projector_simple_fwd.1} parent=1 // pred_check
      _
    $region19: #{bold_projector_simple_fwd.1} parent=1 // pred_check_branch
      %41 = sbr.rel (0) target = $region21
    $region20: #{bold_projector_simple_fwd.1} parent=1 // pred_region
      %42 = dma.done [#allocation6], 512
    $region21: #{bold_projector_simple_fwd.1} parent=1 // pred_fallthru
      _
    %v43 = vld [vmem:[#allocation2] sm:$0xff]
    %v44 = vld [vmem:[#allocation2 + $0x8] sm:$0xff]
    %v45 = vld [vmem:[#allocation5] sm:$0xff]
    %v46 = vld [vmem:[#allocation5 + $0x8] sm:$0xff]
    %v47 = vld [vmem:[#allocation5 + $0x10] sm:$0xff]
    %v48 = vld [vmem:[#allocation5 + $0x18] sm:$0xff]
    %v49 = vld [vmem:[%s2] sm:$0x1]
    %v51 = vlaneseq
    %v52 = vshrl.u32 %v51, 7
    %v53 = vsub.s32 0, %v52
    %v54 = vrot.slane %v49, %v53
    %vm56 = vcmask 261120
    %v58 = vsel %vm56, %v43, 0
    %v61 = vsel %vm56, %v44, 0
    %63 = vmatprep.subr.mxu0 0.0
    %64 = vmatpush1.msra.mxu0 %v45
    %65 = vmatprep.subr.mxu0 0.0
    %66 = vmatpush1.msra.mxu0 %v46
    %67 = vmatprep.subr.mxu0 0.0
    %68 = vmatpush1.msra.mxu0 %v47
    %69 = vmatprep.subr.mxu0 0.0
    %70 = vmatpush1.msra.mxu0 %v48
    %71 = vmatprep.subr.mxu0 0.0
    %72 = vmatpush1.msra.mxu0 0.0
    %73 = vmatprep.subr.mxu0 0.0
    %74 = vmatpush1.msra.mxu0 0.0
    %75 = vmatprep.subr.mxu0 0.0
    %76 = vmatpush1.msra.mxu0 0.0
    %77 = vmatprep.subr.mxu0 0.0
    %78 = vmatpush1.msra.mxu0 0.0
    %79 = vmatprep.subr.mxu0 0.0
    %80 = vmatpush1.msra.mxu0 0.0
    %81 = vmatprep.subr.mxu0 0.0
    %82 = vmatpush1.msra.mxu0 0.0
    %83 = vmatprep.subr.mxu0 0.0
    %84 = vmatpush1.msra.mxu0 0.0
    %85 = vmatprep.subr.mxu0 0.0
    %86 = vmatpush1.msra.mxu0 0.0
    %87 = vmatprep.subr.mxu0 0.0
    %88 = vmatpush1.msra.mxu0 0.0
    %89 = vmatprep.subr.mxu0 0.0
    %90 = vmatpush1.msra.mxu0 0.0
    %91 = vmatprep.subr.mxu0 0.0
    %92 = vmatpush1.msra.mxu0 0.0
    %93 = vmatprep.subr.mxu0 0.0
    %94 = vmatpush1.msra.mxu0 0.0
    %95 = vmatprep.subr.mxu0 0.0
    %96 = vmatpush1.msra.mxu0 0.0
    %97 = vmatprep.subr.mxu0 0.0
    %98 = vmatpush1.msra.mxu0 0.0
    %99 = vmatprep.subr.mxu0 0.0
    %100 = vmatpush1.msra.mxu0 0.0
    %101 = vmatprep.subr.mxu0 0.0
    %102 = vmatpush1.msra.mxu0 0.0
    %103 = vmatprep.subr.mxu0 0.0
    %104 = vmatpush1.msra.mxu0 0.0
    %105 = vmatprep.subr.mxu0 0.0
    %106 = vmatpush1.msra.mxu0 0.0
    %107 = vmatprep.subr.mxu0 0.0
    %108 = vmatpush1.msra.mxu0 0.0
    %109 = vmatprep.subr.mxu0 0.0
    %110 = vmatpush1.msra.mxu0 0.0
    %111 = vmatprep.subr.mxu0 0.0
    %112 = vmatpush1.msra.mxu0 0.0
    %113 = vmatprep.subr.mxu0 0.0
    %114 = vmatpush1.msra.mxu0 0.0
    %115 = vmatprep.subr.mxu0 0.0
    %116 = vmatpush1.msra.mxu0 0.0
    %117 = vmatprep.subr.mxu0 0.0
    %118 = vmatpush1.msra.mxu0 0.0
    %119 = vmatprep.subr.mxu0 0.0
    %120 = vmatpush1.msra.mxu0 0.0
    %121 = vmatprep.subr.mxu0 0.0
    %122 = vmatpush1.msra.mxu0 0.0
    %123 = vmatprep.subr.mxu0 0.0
    %124 = vmatpush1.msra.mxu0 0.0
    %125 = vmatprep.subr.mxu0 0.0
    %126 = vmatpush1.msra.mxu0 0.0
    %127 = vmatprep.mubr.f32.mxu0 0.0
    %128 = vmatmul.mubr.f32.gmra.mrb[0].mxu0 %v58
    %v129 = vpop.f32.mrb[0].mxu0
    %v130 = vadd.f32 %v54, %v129
    %v131 = vpop.f32.mrb[0].mxu0
    %132 = vmatprep.mubr.f32.mxu0 0.0
    %133 = vmatmul.mubr.f32.gmra.mrb[0].mxu0 %v61
    %v134 = vpop.f32.mrb[0].mxu0
    %v135 = vadd.f32 %v54, %v134
    %v136 = vpop.f32.mrb[0].mxu0
    %137 = vdwg.mxu0
    %138 = vst [vmem:[#allocation7] sm:$0xff] %v130
    %139 = vst [vmem:[#allocation7 + $0x8] sm:$0xff] %v135
    // Predicated region
    $region22: #{bold_projector_simple_fwd.1} parent=1 // pred_check
      _
    $region23: #{bold_projector_simple_fwd.1} parent=1 // pred_check_branch
      %141 = sbr.rel (0) target = $region25
    $region24: #{bold_projector_simple_fwd.1} parent=1 // pred_region
      %s143 = ssub.s32 256, 256
      %144 = vsyncadd [#allocation4], %s143
      %s145 = sshll.u32 [#allocation7], 4
      %s146 = int_to_ptr.vmem [resolvable:$true] %s145
      %151 = dma.vmem_to_hbm [thread:$0]  %s146, 256, %s3, [#allocation4], 128, 128, 8
    $region25: #{bold_projector_simple_fwd.1} parent=1 // pred_fallthru
      _
    // Predicated region
    $region26: #{bold_projector_simple_fwd.1} parent=1 // pred_check
      _
    $region27: #{bold_projector_simple_fwd.1} parent=1 // pred_check_branch
      %153 = sbr.rel (0) target = $region29
    $region28: #{bold_projector_simple_fwd.1} parent=1 // pred_region
      %154 = dma.done [#allocation4], 256
    $region29: #{bold_projector_simple_fwd.1} parent=1 // pred_fallthru
      _
    %155 = vsyncpa [#allocation3], 1
    %156 = vsyncpa [#allocation6], 1
    %157 = vsyncpa [#allocation4], 1

</llo_original>
